<compile_context>
chip_gen: v7x
topology: tpu7x:2x2x1
jax: 0.10.0
libtpu: 0.0.40
codegen_flags: <defaults>
</compile_context>

<pallas_src>
import functools

import jax
import jax.numpy as jnp
from jax import lax
from jax.experimental import pallas as pl
from jax.experimental.pallas import tpu as pltpu


def _banded_weights(w_oihw, W):
    """Fold the 3 horizontal taps (incl. zero boundary taps) of a 3x3/stride1/pad1 conv into a
    banded matmul weight over UNPADDED columns.

    Returns band of shape (3, W*Cin, W*Cout) such that, with row-flattened input
    x_flat[row, w*Cin + ci] and p[0] = p[H+1] = 0, p[1..H] = x_flat:

        conv(x)[h, w*Cout + co] = sum_dy ( p[h+dy, :] @ band[dy] )[w*Cout + co]
    """
    Kh, Kw = w_oihw.shape[2], w_oihw.shape[3]
    assert Kh == 3 and Kw == 3, "band construction assumes 3x3 kernel, stride 1, pad 1"
    wt = jnp.transpose(w_oihw, (2, 3, 1, 0))              # OIHW -> (ky, kx, Cin, Cout)
    _, _, Cin, Cout = wt.shape
    wi = jnp.arange(W)[:, None]                            # input column
    wo = jnp.arange(W)[None, :]                            # output column
    d = wi - wo + 1                                        # == dx where valid
    valid = (d >= 0) & (d < Kw)
    dc = jnp.clip(d, 0, Kw - 1)
    g = wt[:, dc]                                          # (Kh, W, W, Cin, Cout)
    g = jnp.where(valid[None, :, :, None, None], g, 0.0)
    band = jnp.transpose(g, (0, 1, 3, 2, 4)).reshape(Kh, W * Cin, W * Cout)
    return band


def _resblock_kernel(x_ref, band1_ref, band2_ref, b1_ref, b2_ref, o_ref, pad, *, H, L):
    # Zero only the 2 vertical-halo rows; interiors are fully overwritten below. Done every step
    # (2 tiny stores) so the kernel stays correct even if the grid axis is split across cores.
    zrow = jnp.zeros((1, L), jnp.float32)
    pad[pl.ds(0, 1), :] = zrow
    pad[pl.ds(H + 1, 1), :] = zrow

    # Stage x into the padded scratch: full-width, lane-aligned store.
    pad[pl.ds(1, H), :] = x_ref[0].astype(jnp.float32)

    # conv1 + bias + ReLU: 3 MXU dots (one per kernel row dy), K = N(mxu) = L.
    acc = jnp.dot(pad[pl.ds(0, H), :], band1_ref[0],
                  preferred_element_type=jnp.float32) + b1_ref[...]
    for dy in (1, 2):
        acc += jnp.dot(pad[pl.ds(dy, H), :], band1_ref[dy],
                       preferred_element_type=jnp.float32)
    h1 = jnp.maximum(acc, 0.0)

    # Reuse the same scratch for conv2 (halo rows stay zero).
    pad[pl.ds(1, H), :] = h1

    # conv2 + bias + residual + ReLU (residual re-reads x_ref; x is not kept live across convs).
    acc2 = jnp.dot(pad[pl.ds(0, H), :], band2_ref[0],
                   preferred_element_type=jnp.float32) \
        + (b2_ref[...] + x_ref[0].astype(jnp.float32))
    for dy in (1, 2):
        acc2 += jnp.dot(pad[pl.ds(dy, H), :], band2_ref[dy],
                        preferred_element_type=jnp.float32)
    o_ref[0] = jnp.maximum(acc2, 0.0).astype(o_ref.dtype)


def _pick_group(N, WC):
    """Largest divisor of N whose packed lane width g*W*C stays within a comfortable budget."""
    g = 1
    for cand in range(1, N + 1):
        if N % cand == 0 and cand * WC <= 1024:
            g = cand
    return g


def residual_block_forward(x_nchw, w1_oihw, b1, w2_oihw, b2):
    """Pallas implementation of ResidualBlock.forward (norm=None, sn=False, downsample=None)."""
    N, C, H, W = x_nchw.shape
    assert w1_oihw.shape == (C, C, 3, 3) and w2_oihw.shape == (C, C, 3, 3)
    WC = W * C
    g = _pick_group(N, WC)          # images packed side-by-side along lanes
    G = N // g                      # grid steps (image groups)
    L = g * WC                      # lane width per group (128 at the test shape)

    # NCHW -> row-flattened NHWC, g images packed along the lane dim.
    # TODO(synk): these wrapper relayouts disappear if the surrounding model keeps NHWC end-to-end.
    x = jnp.transpose(x_nchw, (0, 2, 3, 1))                                  # (N, H, W, C)
    x = x.reshape(G, g, H, W, C).transpose(0, 2, 1, 3, 4).reshape(G, H, L)   # (G, H, L)

    # Banded weights (horizontal padding folded in), block-diagonal over the g packed images.
    eye_g = jnp.eye(g, dtype=jnp.float32)
    band1 = jnp.einsum('ij,dkl->dikjl', eye_g, _banded_weights(w1_oihw, W)).reshape(3, L, L)
    band2 = jnp.einsum('ij,dkl->dikjl', eye_g, _banded_weights(w2_oihw, W)).reshape(3, L, L)
    b1_t = jnp.tile(b1, g * W).reshape(1, L)
    b2_t = jnp.tile(b2, g * W).reshape(1, L)

    kernel = functools.partial(_resblock_kernel, H=H, L=L)

    cost = pl.CostEstimate(
        flops=2 * 3 * 2 * G * H * L * L,               # 2 convs x 3 dy dots of (H,L)x(L,L)
        transcendentals=0,
        bytes_accessed=2 * N * C * H * W * 4 + 2 * 3 * L * L * 4 + 2 * L * 4)

    out = pl.pallas_call(
        kernel,
        out_shape=jax.ShapeDtypeStruct((G, H, L), jnp.float32),
        grid=(G,),
        in_specs=[
            pl.BlockSpec((1, H, L), lambda b: (b, 0, 0)),     # x (one image group)
            pl.BlockSpec((3, L, L), lambda b: (0, 0, 0)),     # banded conv1 weights
            pl.BlockSpec((3, L, L), lambda b: (0, 0, 0)),     # banded conv2 weights
            pl.BlockSpec((1, L), lambda b: (0, 0)),           # bias1 (tiled over g*W)
            pl.BlockSpec((1, L), lambda b: (0, 0)),           # bias2 (tiled over g*W)
        ],
        out_specs=pl.BlockSpec((1, H, L), lambda b: (b, 0, 0)),
        scratch_shapes=[
            pltpu.VMEM((H + 2, L), jnp.float32),    # single vertically-padded scratch, reused by both convs
        ],
        compiler_params=pltpu.CompilerParams(
            dimension_semantics=("parallel",)),
        cost_estimate=cost,
    )(x, band1, band2, b1_t, b2_t)

    # Un-pack the lane grouping and return NCHW to match the PyTorch convention.
    out = out.reshape(G, H, g, W, C).transpose(0, 2, 1, 3, 4).reshape(N, H, W, C)
    return jnp.transpose(out, (0, 3, 1, 2))


def _reference_forward(x_nchw, w1_oihw, b1, w2_oihw, b2):
    """Pure-JAX (lax.conv) reference for correctness checking."""
    def conv(x, w, b):
        y = lax.conv_general_dilated(
            x, w, window_strides=(1, 1), padding=((1, 1), (1, 1)),
            dimension_numbers=("NCHW", "OIHW", "NCHW"))
        return y + b[None, :, None, None]

    h = jnp.maximum(conv(x_nchw, w1_oihw, b1), 0.0)
    out = conv(h, w2_oihw, b2) + x_nchw
    return jnp.maximum(out, 0.0)


if __name__ == "__main__":
    # in_channels == out_channels so the identity residual is valid (downsample=None).
    N, C, H, W = 2, 4, 16, 16

    key = jax.random.PRNGKey(0)
    k_x, k_w1, k_b1, k_w2, k_b2 = jax.random.split(key, 5)

    x = jax.random.normal(k_x, (N, C, H, W), jnp.float32)
    # PyTorch conv parameter layout: OIHW weights, (C,) biases.
    w1 = jax.random.normal(k_w1, (C, C, 3, 3), jnp.float32) * 0.1
    b1 = jax.random.normal(k_b1, (C,), jnp.float32) * 0.1
    w2 = jax.random.normal(k_w2, (C, C, 3, 3), jnp.float32) * 0.1
    b2 = jax.random.normal(k_b2, (C,), jnp.float32) * 0.1

    out = residual_block_forward(x, w1, b1, w2, b2)
    out = jax.block_until_ready(out)

    ref = _reference_forward(x, w1, b1, w2, b2)
    assert out.shape == (N, C, H, W)
    assert jnp.allclose(out, ref, atol=1e-4, rtol=1e-4), "mismatch vs reference"

    print("KERNEL_OK")
</pallas_src>

<mosaic_0001>
module attributes {stable_mosaic.version = 11 : i64} {
  func.func @_resblock_kernel(%arg0: i32, %arg1: memref<1x16x128xf32, #tpu.memory_space<vmem>>, %arg2: memref<3x128x128xf32, #tpu.memory_space<vmem>>, %arg3: memref<3x128x128xf32, #tpu.memory_space<vmem>>, %arg4: memref<1x128xf32, #tpu.memory_space<vmem>>, %arg5: memref<1x128xf32, #tpu.memory_space<vmem>>, %arg6: memref<1x16x128xf32, #tpu.memory_space<vmem>>, %arg7: memref<18x128xf32, #tpu.memory_space<vmem>>) attributes {dimension_semantics = [#tpu.dimension_semantics<parallel>], iteration_bounds = array<i64: 1>, scalar_prefetch = 0 : i64, scratch_operands = 1 : i64, tpu.core_type = #tpu.core_type<tc>, window_params = [{transform_indices = @transform_0, window_bounds = array<i64: 1, 16, 128>}, {pipeline_mode = #tpu.pipeline_mode<synchronous>, transform_indices = @transform_1, window_bounds = array<i64: 3, 128, 128>}, {pipeline_mode = #tpu.pipeline_mode<synchronous>, transform_indices = @transform_2, window_bounds = array<i64: 3, 128, 128>}, {pipeline_mode = #tpu.pipeline_mode<synchronous>, transform_indices = @transform_3, window_bounds = array<i64: 1, 128>}, {pipeline_mode = #tpu.pipeline_mode<synchronous>, transform_indices = @transform_4, window_bounds = array<i64: 1, 128>}, {transform_indices = @transform_5, window_bounds = array<i64: 1, 16, 128>}]} {
    %cst = arith.constant 0.000000e+00 : f32
    %0 = vector.broadcast %cst : f32 to vector<1x128xf32>
    %c0 = arith.constant 0 : index
    %c0_0 = arith.constant 0 : index
    %1 = vector.load %arg7[%c0, %c0_0] : memref<18x128xf32, #tpu.memory_space<vmem>>, vector<1x128xf32>
    tpu.vector_store %arg7[%c0, %c0_0], %0 {strides = array<i32>} : memref<18x128xf32, #tpu.memory_space<vmem>>, vector<1x128xf32>,
    %c17 = arith.constant 17 : index
    %c0_1 = arith.constant 0 : index
    %2 = vector.load %arg7[%c17, %c0_1] : memref<18x128xf32, #tpu.memory_space<vmem>>, vector<1x128xf32>
    tpu.vector_store %arg7[%c17, %c0_1], %0 {strides = array<i32>} : memref<18x128xf32, #tpu.memory_space<vmem>>, vector<1x128xf32>,
    %c0_2 = arith.constant 0 : index
    %c0_3 = arith.constant 0 : index
    %c0_4 = arith.constant 0 : index
    %3 = vector.load %arg1[%c0_2, %c0_3, %c0_4] : memref<1x16x128xf32, #tpu.memory_space<vmem>>, vector<1x16x128xf32>
    %4 = vector.shape_cast %3 : vector<1x16x128xf32> to vector<16x128xf32>
    %c1 = arith.constant 1 : index
    %c0_5 = arith.constant 0 : index
    %5 = vector.load %arg7[%c1, %c0_5] : memref<18x128xf32, #tpu.memory_space<vmem>>, vector<16x128xf32>
    tpu.vector_store %arg7[%c1, %c0_5], %4 {strides = array<i32>} : memref<18x128xf32, #tpu.memory_space<vmem>>, vector<16x128xf32>,
    %c0_6 = arith.constant 0 : index
    %c0_7 = arith.constant 0 : index
    %6 = vector.load %arg7[%c0_6, %c0_7] : memref<18x128xf32, #tpu.memory_space<vmem>>, vector<16x128xf32>
    %c0_8 = arith.constant 0 : index
    %c0_9 = arith.constant 0 : index
    %c0_10 = arith.constant 0 : index
    %7 = vector.load %arg2[%c0_8, %c0_9, %c0_10] : memref<3x128x128xf32, #tpu.memory_space<vmem>>, vector<1x128x128xf32>
    %8 = vector.shape_cast %7 : vector<1x128x128xf32> to vector<128x128xf32>
    %cst_11 = arith.constant dense<0.000000e+00> : vector<16x128xf32>
    %9 = tpu.matmul %6, %8, %cst_11 {dimension_numbers = #tpu.dot_dimension_numbers<[1], [0], [0], [1], [0, 0, 1, 1], [], []>} : vector<16x128xf32>, vector<128x128xf32>, vector<16x128xf32> -> vector<16x128xf32>
    %c0_12 = arith.constant 0 : index
    %c0_13 = arith.constant 0 : index
    %10 = vector.load %arg4[%c0_12, %c0_13] : memref<1x128xf32, #tpu.memory_space<vmem>>, vector<1x128xf32>
    %11 = vector.broadcast %10 : vector<1x128xf32> to vector<16x128xf32>
    %12 = arith.addf %9, %11 : vector<16x128xf32>
    %c1_14 = arith.constant 1 : index
    %c0_15 = arith.constant 0 : index
    %13 = vector.load %arg7[%c1_14, %c0_15] : memref<18x128xf32, #tpu.memory_space<vmem>>, vector<16x128xf32>
    %c1_16 = arith.constant 1 : index
    %c0_17 = arith.constant 0 : index
    %c0_18 = arith.constant 0 : index
    %14 = vector.load %arg2[%c1_16, %c0_17, %c0_18] : memref<3x128x128xf32, #tpu.memory_space<vmem>>, vector<1x128x128xf32>
    %15 = vector.shape_cast %14 : vector<1x128x128xf32> to vector<128x128xf32>
    %cst_19 = arith.constant dense<0.000000e+00> : vector<16x128xf32>
    %16 = tpu.matmul %13, %15, %cst_19 {dimension_numbers = #tpu.dot_dimension_numbers<[1], [0], [0], [1], [0, 0, 1, 1], [], []>} : vector<16x128xf32>, vector<128x128xf32>, vector<16x128xf32> -> vector<16x128xf32>
    %17 = arith.addf %12, %16 : vector<16x128xf32>
    %c2 = arith.constant 2 : index
    %c0_20 = arith.constant 0 : index
    %18 = vector.load %arg7[%c2, %c0_20] : memref<18x128xf32, #tpu.memory_space<vmem>>, vector<16x128xf32>
    %c2_21 = arith.constant 2 : index
    %c0_22 = arith.constant 0 : index
    %c0_23 = arith.constant 0 : index
    %19 = vector.load %arg2[%c2_21, %c0_22, %c0_23] : memref<3x128x128xf32, #tpu.memory_space<vmem>>, vector<1x128x128xf32>
    %20 = vector.shape_cast %19 : vector<1x128x128xf32> to vector<128x128xf32>
    %cst_24 = arith.constant dense<0.000000e+00> : vector<16x128xf32>
    %21 = tpu.matmul %18, %20, %cst_24 {dimension_numbers = #tpu.dot_dimension_numbers<[1], [0], [0], [1], [0, 0, 1, 1], [], []>} : vector<16x128xf32>, vector<128x128xf32>, vector<16x128xf32> -> vector<16x128xf32>
    %22 = arith.addf %17, %21 : vector<16x128xf32>
    %cst_25 = arith.constant 0.000000e+00 : f32
    %23 = vector.broadcast %cst_25 : f32 to vector<16x128xf32>
    %24 = arith.maximumf %22, %23 : vector<16x128xf32>
    %c1_26 = arith.constant 1 : index
    %c0_27 = arith.constant 0 : index
    %25 = vector.load %arg7[%c1_26, %c0_27] : memref<18x128xf32, #tpu.memory_space<vmem>>, vector<16x128xf32>
    tpu.vector_store %arg7[%c1_26, %c0_27], %24 {strides = array<i32>} : memref<18x128xf32, #tpu.memory_space<vmem>>, vector<16x128xf32>,
    %c0_28 = arith.constant 0 : index
    %c0_29 = arith.constant 0 : index
    %26 = vector.load %arg7[%c0_28, %c0_29] : memref<18x128xf32, #tpu.memory_space<vmem>>, vector<16x128xf32>
    %c0_30 = arith.constant 0 : index
    %c0_31 = arith.constant 0 : index
    %c0_32 = arith.constant 0 : index
    %27 = vector.load %arg3[%c0_30, %c0_31, %c0_32] : memref<3x128x128xf32, #tpu.memory_space<vmem>>, vector<1x128x128xf32>
    %28 = vector.shape_cast %27 : vector<1x128x128xf32> to vector<128x128xf32>
    %cst_33 = arith.constant dense<0.000000e+00> : vector<16x128xf32>
    %29 = tpu.matmul %26, %28, %cst_33 {dimension_numbers = #tpu.dot_dimension_numbers<[1], [0], [0], [1], [0, 0, 1, 1], [], []>} : vector<16x128xf32>, vector<128x128xf32>, vector<16x128xf32> -> vector<16x128xf32>
    %c0_34 = arith.constant 0 : index
    %c0_35 = arith.constant 0 : index
    %30 = vector.load %arg5[%c0_34, %c0_35] : memref<1x128xf32, #tpu.memory_space<vmem>>, vector<1x128xf32>
    %c0_36 = arith.constant 0 : index
    %c0_37 = arith.constant 0 : index
    %c0_38 = arith.constant 0 : index
    %31 = vector.load %arg1[%c0_36, %c0_37, %c0_38] : memref<1x16x128xf32, #tpu.memory_space<vmem>>, vector<1x16x128xf32>
    %32 = vector.shape_cast %31 : vector<1x16x128xf32> to vector<16x128xf32>
    %33 = vector.broadcast %30 : vector<1x128xf32> to vector<16x128xf32>
    %34 = arith.addf %33, %32 : vector<16x128xf32>
    %35 = arith.addf %29, %34 : vector<16x128xf32>
    %c1_39 = arith.constant 1 : index
    %c0_40 = arith.constant 0 : index
    %36 = vector.load %arg7[%c1_39, %c0_40] : memref<18x128xf32, #tpu.memory_space<vmem>>, vector<16x128xf32>
    %c1_41 = arith.constant 1 : index
    %c0_42 = arith.constant 0 : index
    %c0_43 = arith.constant 0 : index
    %37 = vector.load %arg3[%c1_41, %c0_42, %c0_43] : memref<3x128x128xf32, #tpu.memory_space<vmem>>, vector<1x128x128xf32>
    %38 = vector.shape_cast %37 : vector<1x128x128xf32> to vector<128x128xf32>
    %cst_44 = arith.constant dense<0.000000e+00> : vector<16x128xf32>
    %39 = tpu.matmul %36, %38, %cst_44 {dimension_numbers = #tpu.dot_dimension_numbers<[1], [0], [0], [1], [0, 0, 1, 1], [], []>} : vector<16x128xf32>, vector<128x128xf32>, vector<16x128xf32> -> vector<16x128xf32>
    %40 = arith.addf %35, %39 : vector<16x128xf32>
    %c2_45 = arith.constant 2 : index
    %c0_46 = arith.constant 0 : index
    %41 = vector.load %arg7[%c2_45, %c0_46] : memref<18x128xf32, #tpu.memory_space<vmem>>, vector<16x128xf32>
    %c2_47 = arith.constant 2 : index
    %c0_48 = arith.constant 0 : index
    %c0_49 = arith.constant 0 : index
    %42 = vector.load %arg3[%c2_47, %c0_48, %c0_49] : memref<3x128x128xf32, #tpu.memory_space<vmem>>, vector<1x128x128xf32>
    %43 = vector.shape_cast %42 : vector<1x128x128xf32> to vector<128x128xf32>
    %cst_50 = arith.constant dense<0.000000e+00> : vector<16x128xf32>
    %44 = tpu.matmul %41, %43, %cst_50 {dimension_numbers = #tpu.dot_dimension_numbers<[1], [0], [0], [1], [0, 0, 1, 1], [], []>} : vector<16x128xf32>, vector<128x128xf32>, vector<16x128xf32> -> vector<16x128xf32>
    %45 = arith.addf %40, %44 : vector<16x128xf32>
    %cst_51 = arith.constant 0.000000e+00 : f32
    %46 = vector.broadcast %cst_51 : f32 to vector<16x128xf32>
    %47 = arith.maximumf %45, %46 : vector<16x128xf32>
    %c0_52 = arith.constant 0 : index
    %c0_53 = arith.constant 0 : index
    %c0_54 = arith.constant 0 : index
    %48 = vector.load %arg6[%c0_52, %c0_53, %c0_54] : memref<1x16x128xf32, #tpu.memory_space<vmem>>, vector<1x16x128xf32>
    %49 = vector.shape_cast %48 : vector<1x16x128xf32> to vector<16x128xf32>
    %50 = vector.shape_cast %47 : vector<16x128xf32> to vector<1x16x128xf32>
    tpu.vector_store %arg6[%c0_52, %c0_53, %c0_54], %50 {strides = array<i32>} : memref<1x16x128xf32, #tpu.memory_space<vmem>>, vector<1x16x128xf32>,
    return
  }
  func.func @transform_0(%arg0: i32) -> (i32, i32, i32) {
    %c0_i32 = arith.constant 0 : i32
    %c0_i32_0 = arith.constant 0 : i32
    %c0_i32_1 = arith.constant 0 : i32
    return %arg0, %c0_i32, %c0_i32_0 : i32, i32, i32
  }
  func.func @transform_1(%arg0: i32) -> (i32, i32, i32) {
    %c0_i32 = arith.constant 0 : i32
    %c0_i32_0 = arith.constant 0 : i32
    %c0_i32_1 = arith.constant 0 : i32
    %c0_i32_2 = arith.constant 0 : i32
    return %c0_i32, %c0_i32_0, %c0_i32_1 : i32, i32, i32
  }
  func.func @transform_2(%arg0: i32) -> (i32, i32, i32) {
    %c0_i32 = arith.constant 0 : i32
    %c0_i32_0 = arith.constant 0 : i32
    %c0_i32_1 = arith.constant 0 : i32
    %c0_i32_2 = arith.constant 0 : i32
    return %c0_i32, %c0_i32_0, %c0_i32_1 : i32, i32, i32
  }
  func.func @transform_3(%arg0: i32) -> (i32, i32) {
    %c0_i32 = arith.constant 0 : i32
    %c0_i32_0 = arith.constant 0 : i32
    %c0_i32_1 = arith.constant 0 : i32
    return %c0_i32, %c0_i32_0 : i32, i32
  }
  func.func @transform_4(%arg0: i32) -> (i32, i32) {
    %c0_i32 = arith.constant 0 : i32
    %c0_i32_0 = arith.constant 0 : i32
    %c0_i32_1 = arith.constant 0 : i32
    return %c0_i32, %c0_i32_0 : i32, i32
  }
  func.func @transform_5(%arg0: i32) -> (i32, i32, i32) {
    %c0_i32 = arith.constant 0 : i32
    %c0_i32_0 = arith.constant 0 : i32
    %c0_i32_1 = arith.constant 0 : i32
    return %arg0, %c0_i32, %c0_i32_0 : i32, i32, i32
  }
}

</mosaic_0001>

<llo_original>
// kernel: tpu_custom_call.1
$region0: #{tpu_custom_call.1}
  #allocation0 [shape = 'u32[]', space=smem, size = 0x4, offset = 0x4, fixed_abs, tag = 'smem constant byte address 0x4 - core index']
  #allocation1 [shape = 'u32[144,128]{1,0:T(1,128)}', space=vmem, size = 0x12000, scoped, tag = 'internal scratch']
  #allocation2 [shape = 'f32[18,128]{1,0:T(8,128)}', space=vmem, size = 0x3000, scoped, tag = 'scratch operand']
  %s0 = inlined_call_operand.hbm [shape: f32[1,16,128], index: 0, kind: input, shape index: {}]
  %s1 = inlined_call_operand.hbm [shape: f32[3,128,128], index: 1, kind: input, shape index: {}]
  %s2 = inlined_call_operand.hbm [shape: f32[3,128,128], index: 2, kind: input, shape index: {}]
  %s3 = inlined_call_operand.vmem [shape: f32[1,128], index: 3, kind: input, shape index: {}]
  %s4 = inlined_call_operand.vmem [shape: f32[1,128], index: 4, kind: input, shape index: {}]
  %s5 = inlined_call_operand.hbm [shape: f32[1,16,128], index: 5, kind: output, shape index: {}]
  %s6 = sld [smem:[#allocation0]]
  $region42: #{tpu_custom_call.1} parent=0
    _
  %s8 = ssub.s32 1, %s6
  %s9 = scalar_select 0, %s8, %s6
  $region1: #{tpu_custom_call.1} parent=0
    #allocation3 [shape = 'u8[8192]{0}', space=vmem, size = 0x2000, scoped, tag = 'input window, operand 0, single buffered']
    #allocation4 [shape = 's32[1]{0}', space=sflag, size = 0x4, scoped, tag = 'scoped memory for tpu_custom_call.1']
    #allocation5 [shape = 's32[1]{0}', space=sflag, size = 0x4, scoped, tag = 'scoped memory for tpu_custom_call.1']
    #allocation6 [shape = 'u8[196608]{0}', space=vmem, size = 0x30000, scoped, tag = 'input window, operand 1, single buffered']
    #allocation7 [shape = 's32[1]{0}', space=sflag, size = 0x4, scoped, tag = 'scoped memory for tpu_custom_call.1']
    #allocation8 [shape = 'u8[196608]{0}', space=vmem, size = 0x30000, scoped, tag = 'input window, operand 2, single buffered']
    #allocation9 [shape = 'u8[8192]{0}', space=vmem, size = 0x2000, scoped, tag = 'output window, operand 0, single buffered']
    %10 = vsyncpa [#allocation4], 0
    %11 = vsyncpa [#allocation7], 0
    %12 = vsyncpa [#allocation5], 0
    // Predicated region
    $region2: #{tpu_custom_call.1} parent=1 // pred_check
      _
    $region3: #{tpu_custom_call.1} parent=1 // pred_check_branch
      %14 = sbr.rel (0) target = $region5
    $region4: #{tpu_custom_call.1} parent=1 // pred_region
      %s16 = ssub.s32 256, 256
      %17 = vsyncadd [#allocation4], %s16
      %s18 = sshll.u32 [#allocation3], 4
      %s19 = int_to_ptr.vmem [resolvable:$true] %s18
      %24 = dma.hbm_to_vmem [thread:$0]  %s0, 256, %s19, [#allocation4], 128, 128, 8
    $region5: #{tpu_custom_call.1} parent=1 // pred_fallthru
      _
    // Predicated region
    $region6: #{tpu_custom_call.1} parent=1 // pred_check
      _
    $region7: #{tpu_custom_call.1} parent=1 // pred_check_branch
      %26 = sbr.rel (0) target = $region9
    $region8: #{tpu_custom_call.1} parent=1 // pred_region
      %s28 = ssub.s32 6144, 6144
      %29 = vsyncadd [#allocation7], %s28
      %s30 = sshll.u32 [#allocation6], 4
      %s31 = int_to_ptr.vmem [resolvable:$true] %s30
      %36 = dma.hbm_to_vmem [thread:$0]  %s1, 6144, %s31, [#allocation7], 128, 128, 8
    $region9: #{tpu_custom_call.1} parent=1 // pred_fallthru
      _
    // Predicated region
    $region10: #{tpu_custom_call.1} parent=1 // pred_check
      _
    $region11: #{tpu_custom_call.1} parent=1 // pred_check_branch
      %38 = sbr.rel (0) target = $region13
    $region12: #{tpu_custom_call.1} parent=1 // pred_region
      %s40 = ssub.s32 6144, 6144
      %41 = vsyncadd [#allocation7], %s40
      %s42 = sshll.u32 [#allocation8], 4
      %s43 = int_to_ptr.vmem [resolvable:$true] %s42
      %48 = dma.hbm_to_vmem [thread:$0]  %s2, 6144, %s43, [#allocation7], 128, 128, 8
    $region13: #{tpu_custom_call.1} parent=1 // pred_fallthru
      _
    // Predicated region
    $region14: #{tpu_custom_call.1} parent=1 // pred_check
      _
    $region15: #{tpu_custom_call.1} parent=1 // pred_check_branch
      %50 = sbr.rel (0) target = $region17
    $region16: #{tpu_custom_call.1} parent=1 // pred_region
      _
    $region17: #{tpu_custom_call.1} parent=1 // pred_fallthru
      _
    // Predicated region
    $region18: #{tpu_custom_call.1} parent=1 // pred_check
      _
    $region19: #{tpu_custom_call.1} parent=1 // pred_check_branch
      %52 = sbr.rel (0) target = $region21
    $region20: #{tpu_custom_call.1} parent=1 // pred_region
      _
    $region21: #{tpu_custom_call.1} parent=1 // pred_fallthru
      _
    // Predicated region
    $region22: #{tpu_custom_call.1} parent=1 // pred_check
      _
    $region23: #{tpu_custom_call.1} parent=1 // pred_check_branch
      %54 = sbr.rel (0) target = $region25
    $region24: #{tpu_custom_call.1} parent=1 // pred_region
      %55 = dma.done [#allocation4], 256
    $region25: #{tpu_custom_call.1} parent=1 // pred_fallthru
      _
    // Predicated region
    $region26: #{tpu_custom_call.1} parent=1 // pred_check
      _
    $region27: #{tpu_custom_call.1} parent=1 // pred_check_branch
      %57 = sbr.rel (0) target = $region29
    $region28: #{tpu_custom_call.1} parent=1 // pred_region
      %58 = dma.done [#allocation7], 6144
    $region29: #{tpu_custom_call.1} parent=1 // pred_fallthru
      _
    // Predicated region
    $region30: #{tpu_custom_call.1} parent=1 // pred_check
      _
    $region31: #{tpu_custom_call.1} parent=1 // pred_check_branch
      %60 = sbr.rel (0) target = $region33
    $region32: #{tpu_custom_call.1} parent=1 // pred_region
      %61 = dma.done [#allocation7], 6144
    $region33: #{tpu_custom_call.1} parent=1 // pred_fallthru
      _
    %62 = vst [vmem:[#allocation2] sm:$0x1] 0.0
    %63 = vst [vmem:[#allocation2 + $0x11] sm:$0x1] 0.0
    %v64 = vld [vmem:[#allocation3] sm:$0xff]
    %v65 = vld [vmem:[#allocation3 + $0x8] sm:$0xff]
    %66 = vst [vmem:[#allocation2 + $0x1] sm:$0xff] %v64
    %67 = vst [vmem:[#allocation2 + $0x9] sm:$0xff] %v65
    %v68 = vld [vmem:[#allocation2] sm:$0xff]
    %v69 = vld [vmem:[#allocation2 + $0x8] sm:$0xff]
    %v70 = vld [vmem:[#allocation6] sm:$0xff]
    %v71 = vld [vmem:[#allocation6 + $0x8] sm:$0xff]
    %v72 = vld [vmem:[#allocation6 + $0x10] sm:$0xff]
    %v73 = vld [vmem:[#allocation6 + $0x18] sm:$0xff]
    %v74 = vld [vmem:[#allocation6 + $0x20] sm:$0xff]
    %v75 = vld [vmem:[#allocation6 + $0x28] sm:$0xff]
    %v76 = vld [vmem:[#allocation6 + $0x30] sm:$0xff]
    %v77 = vld [vmem:[#allocation6 + $0x38] sm:$0xff]
    %v78 = vld [vmem:[#allocation6 + $0x40] sm:$0xff]
    %v79 = vld [vmem:[#allocation6 + $0x48] sm:$0xff]
    %v80 = vld [vmem:[#allocation6 + $0x50] sm:$0xff]
    %v81 = vld [vmem:[#allocation6 + $0x58] sm:$0xff]
    %v82 = vld [vmem:[#allocation6 + $0x60] sm:$0xff]
    %v83 = vld [vmem:[#allocation6 + $0x68] sm:$0xff]
    %v84 = vld [vmem:[#allocation6 + $0x70] sm:$0xff]
    %v85 = vld [vmem:[#allocation6 + $0x78] sm:$0xff]
    %v86 = vld [vmem:[%s3] sm:$0x1]
    %v88 = vlaneseq
    %v89 = vshrl.u32 %v88, 7
    %v90 = vsub.s32 0, %v89
    %v91 = vrot.slane %v86, %v90
    %93 = vmatprep.subr.mxu0 0.0
    %94 = vmatpush1.msra.mxu0 %v70
    %95 = vmatprep.subr.mxu0 0.0
    %96 = vmatpush1.msra.mxu0 %v71
    %97 = vmatprep.subr.mxu0 0.0
    %98 = vmatpush1.msra.mxu0 %v72
    %99 = vmatprep.subr.mxu0 0.0
    %100 = vmatpush1.msra.mxu0 %v73
    %101 = vmatprep.subr.mxu0 0.0
    %102 = vmatpush1.msra.mxu0 %v74
    %103 = vmatprep.subr.mxu0 0.0
    %104 = vmatpush1.msra.mxu0 %v75
    %105 = vmatprep.subr.mxu0 0.0
    %106 = vmatpush1.msra.mxu0 %v76
    %107 = vmatprep.subr.mxu0 0.0
    %108 = vmatpush1.msra.mxu0 %v77
    %109 = vmatprep.subr.mxu0 0.0
    %110 = vmatpush1.msra.mxu0 %v78
    %111 = vmatprep.subr.mxu0 0.0
    %112 = vmatpush1.msra.mxu0 %v79
    %113 = vmatprep.subr.mxu0 0.0
    %114 = vmatpush1.msra.mxu0 %v80
    %115 = vmatprep.subr.mxu0 0.0
    %116 = vmatpush1.msra.mxu0 %v81
    %117 = vmatprep.subr.mxu0 0.0
    %118 = vmatpush1.msra.mxu0 %v82
    %119 = vmatprep.subr.mxu0 0.0
    %120 = vmatpush1.msra.mxu0 %v83
    %121 = vmatprep.subr.mxu0 0.0
    %122 = vmatpush1.msra.mxu0 %v84
    %123 = vmatprep.subr.mxu0 0.0
    %124 = vmatpush1.msra.mxu0 %v85
    %125 = vmatprep.subr.mxu0 0.0
    %126 = vmatpush1.msra.mxu0 0.0
    %127 = vmatprep.subr.mxu0 0.0
    %128 = vmatpush1.msra.mxu0 0.0
    %129 = vmatprep.subr.mxu0 0.0
    %130 = vmatpush1.msra.mxu0 0.0
    %131 = vmatprep.subr.mxu0 0.0
    %132 = vmatpush1.msra.mxu0 0.0
    %133 = vmatprep.subr.mxu0 0.0
    %134 = vmatpush1.msra.mxu0 0.0
    %135 = vmatprep.subr.mxu0 0.0
    %136 = vmatpush1.msra.mxu0 0.0
    %137 = vmatprep.subr.mxu0 0.0
    %138 = vmatpush1.msra.mxu0 0.0
    %139 = vmatprep.subr.mxu0 0.0
    %140 = vmatpush1.msra.mxu0 0.0
    %141 = vmatprep.subr.mxu0 0.0
    %142 = vmatpush1.msra.mxu0 0.0
    %143 = vmatprep.subr.mxu0 0.0
    %144 = vmatpush1.msra.mxu0 0.0
    %145 = vmatprep.subr.mxu0 0.0
    %146 = vmatpush1.msra.mxu0 0.0
    %147 = vmatprep.subr.mxu0 0.0
    %148 = vmatpush1.msra.mxu0 0.0
    %149 = vmatprep.subr.mxu0 0.0
    %150 = vmatpush1.msra.mxu0 0.0
    %151 = vmatprep.subr.mxu0 0.0
    %152 = vmatpush1.msra.mxu0 0.0
    %153 = vmatprep.subr.mxu0 0.0
    %154 = vmatpush1.msra.mxu0 0.0
    %155 = vmatprep.subr.mxu0 0.0
    %156 = vmatpush1.msra.mxu0 0.0
    %157 = vmatprep.mubr.f32.mxu0 0.0
    %158 = vmatmul.mubr.f32.gmra.mrb[0].mxu0 %v68
    %v159 = vpop.f32.mrb[0].mxu0
    %v160 = vadd.f32 %v91, %v159
    %v161 = vpop.f32.mrb[0].mxu0
    %162 = vmatprep.mubr.f32.mxu0 0.0
    %163 = vmatmul.mubr.f32.gmra.mrb[0].mxu0 %v69
    %v164 = vpop.f32.mrb[0].mxu0
    %v165 = vadd.f32 %v91, %v164
    %v166 = vpop.f32.mrb[0].mxu0
    %167 = vdwg.mxu0
    %v168 = vld [vmem:[#allocation2 + $0x1] sm:$0xff]
    %v169 = vld [vmem:[#allocation2 + $0x9] sm:$0xff]
    %s170 = scalar_lea.vmem [#allocation6], 128
    %v171 = vld [vmem:[%s170] sm:$0xff]
    %v172 = vld [vmem:[%s170 + $0x8] sm:$0xff]
    %v173 = vld [vmem:[%s170 + $0x10] sm:$0xff]
    %v174 = vld [vmem:[%s170 + $0x18] sm:$0xff]
    %v175 = vld [vmem:[%s170 + $0x20] sm:$0xff]
    %v176 = vld [vmem:[%s170 + $0x28] sm:$0xff]
    %v177 = vld [vmem:[%s170 + $0x30] sm:$0xff]
    %v178 = vld [vmem:[%s170 + $0x38] sm:$0xff]
    %v179 = vld [vmem:[%s170 + $0x40] sm:$0xff]
    %v180 = vld [vmem:[%s170 + $0x48] sm:$0xff]
    %v181 = vld [vmem:[%s170 + $0x50] sm:$0xff]
    %v182 = vld [vmem:[%s170 + $0x58] sm:$0xff]
    %v183 = vld [vmem:[%s170 + $0x60] sm:$0xff]
    %v184 = vld [vmem:[%s170 + $0x68] sm:$0xff]
    %v185 = vld [vmem:[%s170 + $0x70] sm:$0xff]
    %v186 = vld [vmem:[%s170 + $0x78] sm:$0xff]
    %187 = vmatprep.subr.mxu0 0.0
    %188 = vmatpush1.msra.mxu0 %v171
    %189 = vmatprep.subr.mxu0 0.0
    %190 = vmatpush1.msra.mxu0 %v172
    %191 = vmatprep.subr.mxu0 0.0
    %192 = vmatpush1.msra.mxu0 %v173
    %193 = vmatprep.subr.mxu0 0.0
    %194 = vmatpush1.msra.mxu0 %v174
    %195 = vmatprep.subr.mxu0 0.0
    %196 = vmatpush1.msra.mxu0 %v175
    %197 = vmatprep.subr.mxu0 0.0
    %198 = vmatpush1.msra.mxu0 %v176
    %199 = vmatprep.subr.mxu0 0.0
    %200 = vmatpush1.msra.mxu0 %v177
    %201 = vmatprep.subr.mxu0 0.0
    %202 = vmatpush1.msra.mxu0 %v178
    %203 = vmatprep.subr.mxu0 0.0
    %204 = vmatpush1.msra.mxu0 %v179
    %205 = vmatprep.subr.mxu0 0.0
    %206 = vmatpush1.msra.mxu0 %v180
    %207 = vmatprep.subr.mxu0 0.0
    %208 = vmatpush1.msra.mxu0 %v181
    %209 = vmatprep.subr.mxu0 0.0
    %210 = vmatpush1.msra.mxu0 %v182
    %211 = vmatprep.subr.mxu0 0.0
    %212 = vmatpush1.msra.mxu0 %v183
    %213 = vmatprep.subr.mxu0 0.0
    %214 = vmatpush1.msra.mxu0 %v184
    %215 = vmatprep.subr.mxu0 0.0
    %216 = vmatpush1.msra.mxu0 %v185
    %217 = vmatprep.subr.mxu0 0.0
    %218 = vmatpush1.msra.mxu0 %v186
    %219 = vmatprep.subr.mxu0 0.0
    %220 = vmatpush1.msra.mxu0 0.0
    %221 = vmatprep.subr.mxu0 0.0
    %222 = vmatpush1.msra.mxu0 0.0
    %223 = vmatprep.subr.mxu0 0.0
    %224 = vmatpush1.msra.mxu0 0.0
    %225 = vmatprep.subr.mxu0 0.0
    %226 = vmatpush1.msra.mxu0 0.0
    %227 = vmatprep.subr.mxu0 0.0
    %228 = vmatpush1.msra.mxu0 0.0
    %229 = vmatprep.subr.mxu0 0.0
    %230 = vmatpush1.msra.mxu0 0.0
    %231 = vmatprep.subr.mxu0 0.0
    %232 = vmatpush1.msra.mxu0 0.0
    %233 = vmatprep.subr.mxu0 0.0
    %234 = vmatpush1.msra.mxu0 0.0
    %235 = vmatprep.subr.mxu0 0.0
    %236 = vmatpush1.msra.mxu0 0.0
    %237 = vmatprep.subr.mxu0 0.0
    %238 = vmatpush1.msra.mxu0 0.0
    %239 = vmatprep.subr.mxu0 0.0
    %240 = vmatpush1.msra.mxu0 0.0
    %241 = vmatprep.subr.mxu0 0.0
    %242 = vmatpush1.msra.mxu0 0.0
    %243 = vmatprep.subr.mxu0 0.0
    %244 = vmatpush1.msra.mxu0 0.0
    %245 = vmatprep.subr.mxu0 0.0
    %246 = vmatpush1.msra.mxu0 0.0
    %247 = vmatprep.subr.mxu0 0.0
    %248 = vmatpush1.msra.mxu0 0.0
    %249 = vmatprep.subr.mxu0 0.0
    %250 = vmatpush1.msra.mxu0 0.0
    %251 = vmatprep.mubr.f32.mxu0 0.0
    %252 = vmatmul.mubr.f32.gmra.mrb[0].mxu0 %v168
    %v253 = vpop.f32.mrb[0].mxu0
    %v254 = vadd.f32 0.0, %v253
    %v255 = vpop.f32.mrb[0].mxu0
    %256 = vmatprep.mubr.f32.mxu0 0.0
    %257 = vmatmul.mubr.f32.gmra.mrb[0].mxu0 %v169
    %v258 = vpop.f32.mrb[0].mxu0
    %v259 = vadd.f32 0.0, %v258
    %v260 = vpop.f32.mrb[0].mxu0
    %261 = vdwg.mxu0
    %v262 = vadd.f32 %v160, %v254
    %v263 = vadd.f32 %v165, %v259
    %v264 = vld [vmem:[#allocation2 + $0x2] sm:$0xff]
    %v265 = vld [vmem:[#allocation2 + $0xa] sm:$0xff]
    %s266 = scalar_lea.vmem [#allocation6], 256
    %v267 = vld [vmem:[%s266] sm:$0xff]
    %v268 = vld [vmem:[%s266 + $0x8] sm:$0xff]
    %v269 = vld [vmem:[%s266 + $0x10] sm:$0xff]
    %v270 = vld [vmem:[%s266 + $0x18] sm:$0xff]
    %v271 = vld [vmem:[%s266 + $0x20] sm:$0xff]
    %v272 = vld [vmem:[%s266 + $0x28] sm:$0xff]
    %v273 = vld [vmem:[%s266 + $0x30] sm:$0xff]
    %v274 = vld [vmem:[%s266 + $0x38] sm:$0xff]
    %v275 = vld [vmem:[%s266 + $0x40] sm:$0xff]
    %v276 = vld [vmem:[%s266 + $0x48] sm:$0xff]
    %v277 = vld [vmem:[%s266 + $0x50] sm:$0xff]
    %v278 = vld [vmem:[%s266 + $0x58] sm:$0xff]
    %v279 = vld [vmem:[%s266 + $0x60] sm:$0xff]
    %v280 = vld [vmem:[%s266 + $0x68] sm:$0xff]
    %v281 = vld [vmem:[%s266 + $0x70] sm:$0xff]
    %v282 = vld [vmem:[%s266 + $0x78] sm:$0xff]
    %283 = vmatprep.subr.mxu0 0.0
    %284 = vmatpush1.msra.mxu0 %v267
    %285 = vmatprep.subr.mxu0 0.0
    %286 = vmatpush1.msra.mxu0 %v268
    %287 = vmatprep.subr.mxu0 0.0
    %288 = vmatpush1.msra.mxu0 %v269
    %289 = vmatprep.subr.mxu0 0.0
    %290 = vmatpush1.msra.mxu0 %v270
    %291 = vmatprep.subr.mxu0 0.0
    %292 = vmatpush1.msra.mxu0 %v271
    %293 = vmatprep.subr.mxu0 0.0
    %294 = vmatpush1.msra.mxu0 %v272
    %295 = vmatprep.subr.mxu0 0.0
    %296 = vmatpush1.msra.mxu0 %v273
    %297 = vmatprep.subr.mxu0 0.0
    %298 = vmatpush1.msra.mxu0 %v274
    %299 = vmatprep.subr.mxu0 0.0
    %300 = vmatpush1.msra.mxu0 %v275
    %301 = vmatprep.subr.mxu0 0.0
    %302 = vmatpush1.msra.mxu0 %v276
    %303 = vmatprep.subr.mxu0 0.0
    %304 = vmatpush1.msra.mxu0 %v277
    %305 = vmatprep.subr.mxu0 0.0
    %306 = vmatpush1.msra.mxu0 %v278
    %307 = vmatprep.subr.mxu0 0.0
    %308 = vmatpush1.msra.mxu0 %v279
    %309 = vmatprep.subr.mxu0 0.0
    %310 = vmatpush1.msra.mxu0 %v280
    %311 = vmatprep.subr.mxu0 0.0
    %312 = vmatpush1.msra.mxu0 %v281
    %313 = vmatprep.subr.mxu0 0.0
    %314 = vmatpush1.msra.mxu0 %v282
    %315 = vmatprep.subr.mxu0 0.0
    %316 = vmatpush1.msra.mxu0 0.0
    %317 = vmatprep.subr.mxu0 0.0
    %318 = vmatpush1.msra.mxu0 0.0
    %319 = vmatprep.subr.mxu0 0.0
    %320 = vmatpush1.msra.mxu0 0.0
    %321 = vmatprep.subr.mxu0 0.0
    %322 = vmatpush1.msra.mxu0 0.0
    %323 = vmatprep.subr.mxu0 0.0
    %324 = vmatpush1.msra.mxu0 0.0
    %325 = vmatprep.subr.mxu0 0.0
    %326 = vmatpush1.msra.mxu0 0.0
    %327 = vmatprep.subr.mxu0 0.0
    %328 = vmatpush1.msra.mxu0 0.0
    %329 = vmatprep.subr.mxu0 0.0
    %330 = vmatpush1.msra.mxu0 0.0
    %331 = vmatprep.subr.mxu0 0.0
    %332 = vmatpush1.msra.mxu0 0.0
    %333 = vmatprep.subr.mxu0 0.0
    %334 = vmatpush1.msra.mxu0 0.0
    %335 = vmatprep.subr.mxu0 0.0
    %336 = vmatpush1.msra.mxu0 0.0
    %337 = vmatprep.subr.mxu0 0.0
    %338 = vmatpush1.msra.mxu0 0.0
    %339 = vmatprep.subr.mxu0 0.0
    %340 = vmatpush1.msra.mxu0 0.0
    %341 = vmatprep.subr.mxu0 0.0
    %342 = vmatpush1.msra.mxu0 0.0
    %343 = vmatprep.subr.mxu0 0.0
    %344 = vmatpush1.msra.mxu0 0.0
    %345 = vmatprep.subr.mxu0 0.0
    %346 = vmatpush1.msra.mxu0 0.0
    %347 = vmatprep.mubr.f32.mxu0 0.0
    %348 = vmatmul.mubr.f32.gmra.mrb[0].mxu0 %v264
    %v349 = vpop.f32.mrb[0].mxu0
    %v350 = vadd.f32 0.0, %v349
    %v351 = vpop.f32.mrb[0].mxu0
    %352 = vmatprep.mubr.f32.mxu0 0.0
    %353 = vmatmul.mubr.f32.gmra.mrb[0].mxu0 %v265
    %v354 = vpop.f32.mrb[0].mxu0
    %v355 = vadd.f32 0.0, %v354
    %v356 = vpop.f32.mrb[0].mxu0
    %357 = vdwg.mxu0
    %v358 = vadd.f32 %v262, %v350
    %v359 = vadd.f32 %v263, %v355
    %v360 = vmax.f32 %v358, 0.0
    %v361 = vmax.f32 %v359, 0.0
    %362 = vst [vmem:[#allocation2 + $0x1] sm:$0xff] %v360
    %363 = vst [vmem:[#allocation2 + $0x9] sm:$0xff] %v361
    %v364 = vld [vmem:[#allocation2] sm:$0xff]
    %v365 = vld [vmem:[#allocation2 + $0x8] sm:$0xff]
    %v366 = vld [vmem:[#allocation8] sm:$0xff]
    %v367 = vld [vmem:[#allocation8 + $0x8] sm:$0xff]
    %v368 = vld [vmem:[#allocation8 + $0x10] sm:$0xff]
    %v369 = vld [vmem:[#allocation8 + $0x18] sm:$0xff]
    %v370 = vld [vmem:[#allocation8 + $0x20] sm:$0xff]
    %v371 = vld [vmem:[#allocation8 + $0x28] sm:$0xff]
    %v372 = vld [vmem:[#allocation8 + $0x30] sm:$0xff]
    %v373 = vld [vmem:[#allocation8 + $0x38] sm:$0xff]
    %v374 = vld [vmem:[#allocation8 + $0x40] sm:$0xff]
    %v375 = vld [vmem:[#allocation8 + $0x48] sm:$0xff]
    %v376 = vld [vmem:[#allocation8 + $0x50] sm:$0xff]
    %v377 = vld [vmem:[#allocation8 + $0x58] sm:$0xff]
    %v378 = vld [vmem:[#allocation8 + $0x60] sm:$0xff]
    %v379 = vld [vmem:[#allocation8 + $0x68] sm:$0xff]
    %v380 = vld [vmem:[#allocation8 + $0x70] sm:$0xff]
    %v381 = vld [vmem:[#allocation8 + $0x78] sm:$0xff]
    %v382 = vld [vmem:[%s4] sm:$0x1]
    %v383 = vld [vmem:[#allocation3] sm:$0xff]
    %v384 = vld [vmem:[#allocation3 + $0x8] sm:$0xff]
    %v386 = vlaneseq
    %v387 = vshrl.u32 %v386, 7
    %v388 = vsub.s32 0, %v387
    %v389 = vrot.slane %v382, %v388
    %v391 = vadd.f32 %v389, %v383
    %v392 = vadd.f32 %v389, %v384
    %393 = vmatprep.subr.mxu0 0.0
    %394 = vmatpush1.msra.mxu0 %v366
    %395 = vmatprep.subr.mxu0 0.0
    %396 = vmatpush1.msra.mxu0 %v367
    %397 = vmatprep.subr.mxu0 0.0
    %398 = vmatpush1.msra.mxu0 %v368
    %399 = vmatprep.subr.mxu0 0.0
    %400 = vmatpush1.msra.mxu0 %v369
    %401 = vmatprep.subr.mxu0 0.0
    %402 = vmatpush1.msra.mxu0 %v370
    %403 = vmatprep.subr.mxu0 0.0
    %404 = vmatpush1.msra.mxu0 %v371
    %405 = vmatprep.subr.mxu0 0.0
    %406 = vmatpush1.msra.mxu0 %v372
    %407 = vmatprep.subr.mxu0 0.0
    %408 = vmatpush1.msra.mxu0 %v373
    %409 = vmatprep.subr.mxu0 0.0
    %410 = vmatpush1.msra.mxu0 %v374
    %411 = vmatprep.subr.mxu0 0.0
    %412 = vmatpush1.msra.mxu0 %v375
    %413 = vmatprep.subr.mxu0 0.0
    %414 = vmatpush1.msra.mxu0 %v376
    %415 = vmatprep.subr.mxu0 0.0
    %416 = vmatpush1.msra.mxu0 %v377
    %417 = vmatprep.subr.mxu0 0.0
    %418 = vmatpush1.msra.mxu0 %v378
    %419 = vmatprep.subr.mxu0 0.0
    %420 = vmatpush1.msra.mxu0 %v379
    %421 = vmatprep.subr.mxu0 0.0
    %422 = vmatpush1.msra.mxu0 %v380
    %423 = vmatprep.subr.mxu0 0.0
    %424 = vmatpush1.msra.mxu0 %v381
    %425 = vmatprep.subr.mxu0 0.0
    %426 = vmatpush1.msra.mxu0 0.0
    %427 = vmatprep.subr.mxu0 0.0
    %428 = vmatpush1.msra.mxu0 0.0
    %429 = vmatprep.subr.mxu0 0.0
    %430 = vmatpush1.msra.mxu0 0.0
    %431 = vmatprep.subr.mxu0 0.0
    %432 = vmatpush1.msra.mxu0 0.0
    %433 = vmatprep.subr.mxu0 0.0
    %434 = vmatpush1.msra.mxu0 0.0
    %435 = vmatprep.subr.mxu0 0.0
    %436 = vmatpush1.msra.mxu0 0.0
    %437 = vmatprep.subr.mxu0 0.0
    %438 = vmatpush1.msra.mxu0 0.0
    %439 = vmatprep.subr.mxu0 0.0
    %440 = vmatpush1.msra.mxu0 0.0
    %441 = vmatprep.subr.mxu0 0.0
    %442 = vmatpush1.msra.mxu0 0.0
    %443 = vmatprep.subr.mxu0 0.0
    %444 = vmatpush1.msra.mxu0 0.0
    %445 = vmatprep.subr.mxu0 0.0
    %446 = vmatpush1.msra.mxu0 0.0
    %447 = vmatprep.subr.mxu0 0.0
    %448 = vmatpush1.msra.mxu0 0.0
    %449 = vmatprep.subr.mxu0 0.0
    %450 = vmatpush1.msra.mxu0 0.0
    %451 = vmatprep.subr.mxu0 0.0
    %452 = vmatpush1.msra.mxu0 0.0
    %453 = vmatprep.subr.mxu0 0.0
    %454 = vmatpush1.msra.mxu0 0.0
    %455 = vmatprep.subr.mxu0 0.0
    %456 = vmatpush1.msra.mxu0 0.0
    %457 = vmatprep.mubr.f32.mxu0 0.0
    %458 = vmatmul.mubr.f32.gmra.mrb[0].mxu0 %v364
    %v459 = vpop.f32.mrb[0].mxu0
    %v460 = vadd.f32 %v391, %v459
    %v461 = vpop.f32.mrb[0].mxu0
    %462 = vmatprep.mubr.f32.mxu0 0.0
    %463 = vmatmul.mubr.f32.gmra.mrb[0].mxu0 %v365
    %v464 = vpop.f32.mrb[0].mxu0
    %v465 = vadd.f32 %v392, %v464
    %v466 = vpop.f32.mrb[0].mxu0
    %467 = vdwg.mxu0
    %v468 = vld [vmem:[#allocation2 + $0x1] sm:$0xff]
    %v469 = vld [vmem:[#allocation2 + $0x9] sm:$0xff]
    %s470 = scalar_lea.vmem [#allocation8], 128
    %v471 = vld [vmem:[%s470] sm:$0xff]
    %v472 = vld [vmem:[%s470 + $0x8] sm:$0xff]
    %v473 = vld [vmem:[%s470 + $0x10] sm:$0xff]
    %v474 = vld [vmem:[%s470 + $0x18] sm:$0xff]
    %v475 = vld [vmem:[%s470 + $0x20] sm:$0xff]
    %v476 = vld [vmem:[%s470 + $0x28] sm:$0xff]
    %v477 = vld [vmem:[%s470 + $0x30] sm:$0xff]
    %v478 = vld [vmem:[%s470 + $0x38] sm:$0xff]
    %v479 = vld [vmem:[%s470 + $0x40] sm:$0xff]
    %v480 = vld [vmem:[%s470 + $0x48] sm:$0xff]
    %v481 = vld [vmem:[%s470 + $0x50] sm:$0xff]
    %v482 = vld [vmem:[%s470 + $0x58] sm:$0xff]
    %v483 = vld [vmem:[%s470 + $0x60] sm:$0xff]
    %v484 = vld [vmem:[%s470 + $0x68] sm:$0xff]
    %v485 = vld [vmem:[%s470 + $0x70] sm:$0xff]
    %v486 = vld [vmem:[%s470 + $0x78] sm:$0xff]
    %487 = vmatprep.subr.mxu0 0.0
    %488 = vmatpush1.msra.mxu0 %v471
    %489 = vmatprep.subr.mxu0 0.0
    %490 = vmatpush1.msra.mxu0 %v472
    %491 = vmatprep.subr.mxu0 0.0
    %492 = vmatpush1.msra.mxu0 %v473
    %493 = vmatprep.subr.mxu0 0.0
    %494 = vmatpush1.msra.mxu0 %v474
    %495 = vmatprep.subr.mxu0 0.0
    %496 = vmatpush1.msra.mxu0 %v475
    %497 = vmatprep.subr.mxu0 0.0
    %498 = vmatpush1.msra.mxu0 %v476
    %499 = vmatprep.subr.mxu0 0.0
    %500 = vmatpush1.msra.mxu0 %v477
    %501 = vmatprep.subr.mxu0 0.0
    %502 = vmatpush1.msra.mxu0 %v478
    %503 = vmatprep.subr.mxu0 0.0
    %504 = vmatpush1.msra.mxu0 %v479
    %505 = vmatprep.subr.mxu0 0.0
    %506 = vmatpush1.msra.mxu0 %v480
    %507 = vmatprep.subr.mxu0 0.0
    %508 = vmatpush1.msra.mxu0 %v481
    %509 = vmatprep.subr.mxu0 0.0
    %510 = vmatpush1.msra.mxu0 %v482
    %511 = vmatprep.subr.mxu0 0.0
    %512 = vmatpush1.msra.mxu0 %v483
    %513 = vmatprep.subr.mxu0 0.0
    %514 = vmatpush1.msra.mxu0 %v484
    %515 = vmatprep.subr.mxu0 0.0
    %516 = vmatpush1.msra.mxu0 %v485
    %517 = vmatprep.subr.mxu0 0.0
    %518 = vmatpush1.msra.mxu0 %v486
    %519 = vmatprep.subr.mxu0 0.0
    %520 = vmatpush1.msra.mxu0 0.0
    %521 = vmatprep.subr.mxu0 0.0
    %522 = vmatpush1.msra.mxu0 0.0
    %523 = vmatprep.subr.mxu0 0.0
    %524 = vmatpush1.msra.mxu0 0.0
    %525 = vmatprep.subr.mxu0 0.0
    %526 = vmatpush1.msra.mxu0 0.0
    %527 = vmatprep.subr.mxu0 0.0
    %528 = vmatpush1.msra.mxu0 0.0
    %529 = vmatprep.subr.mxu0 0.0
    %530 = vmatpush1.msra.mxu0 0.0
    %531 = vmatprep.subr.mxu0 0.0
    %532 = vmatpush1.msra.mxu0 0.0
    %533 = vmatprep.subr.mxu0 0.0
    %534 = vmatpush1.msra.mxu0 0.0
    %535 = vmatprep.subr.mxu0 0.0
    %536 = vmatpush1.msra.mxu0 0.0
    %537 = vmatprep.subr.mxu0 0.0
    %538 = vmatpush1.msra.mxu0 0.0
    %539 = vmatprep.subr.mxu0 0.0
    %540 = vmatpush1.msra.mxu0 0.0
    %541 = vmatprep.subr.mxu0 0.0
    %542 = vmatpush1.msra.mxu0 0.0
    %543 = vmatprep.subr.mxu0 0.0
    %544 = vmatpush1.msra.mxu0 0.0
    %545 = vmatprep.subr.mxu0 0.0
    %546 = vmatpush1.msra.mxu0 0.0
    %547 = vmatprep.subr.mxu0 0.0
    %548 = vmatpush1.msra.mxu0 0.0
    %549 = vmatprep.subr.mxu0 0.0
    %550 = vmatpush1.msra.mxu0 0.0
    %551 = vmatprep.mubr.f32.mxu0 0.0
    %552 = vmatmul.mubr.f32.gmra.mrb[0].mxu0 %v468
    %v553 = vpop.f32.mrb[0].mxu0
    %v554 = vadd.f32 0.0, %v553
    %v555 = vpop.f32.mrb[0].mxu0
    %556 = vmatprep.mubr.f32.mxu0 0.0
    %557 = vmatmul.mubr.f32.gmra.mrb[0].mxu0 %v469
    %v558 = vpop.f32.mrb[0].mxu0
    %v559 = vadd.f32 0.0, %v558
    %v560 = vpop.f32.mrb[0].mxu0
    %561 = vdwg.mxu0
    %v562 = vadd.f32 %v460, %v554
    %v563 = vadd.f32 %v465, %v559
    %v564 = vld [vmem:[#allocation2 + $0x2] sm:$0xff]
    %v565 = vld [vmem:[#allocation2 + $0xa] sm:$0xff]
    %s566 = scalar_lea.vmem [#allocation8], 256
    %v567 = vld [vmem:[%s566] sm:$0xff]
    %v568 = vld [vmem:[%s566 + $0x8] sm:$0xff]
    %v569 = vld [vmem:[%s566 + $0x10] sm:$0xff]
    %v570 = vld [vmem:[%s566 + $0x18] sm:$0xff]
    %v571 = vld [vmem:[%s566 + $0x20] sm:$0xff]
    %v572 = vld [vmem:[%s566 + $0x28] sm:$0xff]
    %v573 = vld [vmem:[%s566 + $0x30] sm:$0xff]
    %v574 = vld [vmem:[%s566 + $0x38] sm:$0xff]
    %v575 = vld [vmem:[%s566 + $0x40] sm:$0xff]
    %v576 = vld [vmem:[%s566 + $0x48] sm:$0xff]
    %v577 = vld [vmem:[%s566 + $0x50] sm:$0xff]
    %v578 = vld [vmem:[%s566 + $0x58] sm:$0xff]
    %v579 = vld [vmem:[%s566 + $0x60] sm:$0xff]
    %v580 = vld [vmem:[%s566 + $0x68] sm:$0xff]
    %v581 = vld [vmem:[%s566 + $0x70] sm:$0xff]
    %v582 = vld [vmem:[%s566 + $0x78] sm:$0xff]
    %583 = vmatprep.subr.mxu0 0.0
    %584 = vmatpush1.msra.mxu0 %v567
    %585 = vmatprep.subr.mxu0 0.0
    %586 = vmatpush1.msra.mxu0 %v568
    %587 = vmatprep.subr.mxu0 0.0
    %588 = vmatpush1.msra.mxu0 %v569
    %589 = vmatprep.subr.mxu0 0.0
    %590 = vmatpush1.msra.mxu0 %v570
    %591 = vmatprep.subr.mxu0 0.0
    %592 = vmatpush1.msra.mxu0 %v571
    %593 = vmatprep.subr.mxu0 0.0
    %594 = vmatpush1.msra.mxu0 %v572
    %595 = vmatprep.subr.mxu0 0.0
    %596 = vmatpush1.msra.mxu0 %v573
    %597 = vmatprep.subr.mxu0 0.0
    %598 = vmatpush1.msra.mxu0 %v574
    %599 = vmatprep.subr.mxu0 0.0
    %600 = vmatpush1.msra.mxu0 %v575
    %601 = vmatprep.subr.mxu0 0.0
    %602 = vmatpush1.msra.mxu0 %v576
    %603 = vmatprep.subr.mxu0 0.0
    %604 = vmatpush1.msra.mxu0 %v577
    %605 = vmatprep.subr.mxu0 0.0
    %606 = vmatpush1.msra.mxu0 %v578
    %607 = vmatprep.subr.mxu0 0.0
    %608 = vmatpush1.msra.mxu0 %v579
    %609 = vmatprep.subr.mxu0 0.0
    %610 = vmatpush1.msra.mxu0 %v580
    %611 = vmatprep.subr.mxu0 0.0
    %612 = vmatpush1.msra.mxu0 %v581
    %613 = vmatprep.subr.mxu0 0.0
    %614 = vmatpush1.msra.mxu0 %v582
    %615 = vmatprep.subr.mxu0 0.0
    %616 = vmatpush1.msra.mxu0 0.0
    %617 = vmatprep.subr.mxu0 0.0
    %618 = vmatpush1.msra.mxu0 0.0
    %619 = vmatprep.subr.mxu0 0.0
    %620 = vmatpush1.msra.mxu0 0.0
    %621 = vmatprep.subr.mxu0 0.0
    %622 = vmatpush1.msra.mxu0 0.0
    %623 = vmatprep.subr.mxu0 0.0
    %624 = vmatpush1.msra.mxu0 0.0
    %625 = vmatprep.subr.mxu0 0.0
    %626 = vmatpush1.msra.mxu0 0.0
    %627 = vmatprep.subr.mxu0 0.0
    %628 = vmatpush1.msra.mxu0 0.0
    %629 = vmatprep.subr.mxu0 0.0
    %630 = vmatpush1.msra.mxu0 0.0
    %631 = vmatprep.subr.mxu0 0.0
    %632 = vmatpush1.msra.mxu0 0.0
    %633 = vmatprep.subr.mxu0 0.0
    %634 = vmatpush1.msra.mxu0 0.0
    %635 = vmatprep.subr.mxu0 0.0
    %636 = vmatpush1.msra.mxu0 0.0
    %637 = vmatprep.subr.mxu0 0.0
    %638 = vmatpush1.msra.mxu0 0.0
    %639 = vmatprep.subr.mxu0 0.0
    %640 = vmatpush1.msra.mxu0 0.0
    %641 = vmatprep.subr.mxu0 0.0
    %642 = vmatpush1.msra.mxu0 0.0
    %643 = vmatprep.subr.mxu0 0.0
    %644 = vmatpush1.msra.mxu0 0.0
    %645 = vmatprep.subr.mxu0 0.0
    %646 = vmatpush1.msra.mxu0 0.0
    %647 = vmatprep.mubr.f32.mxu0 0.0
    %648 = vmatmul.mubr.f32.gmra.mrb[0].mxu0 %v564
    %v649 = vpop.f32.mrb[0].mxu0
    %v650 = vadd.f32 0.0, %v649
    %v651 = vpop.f32.mrb[0].mxu0
    %652 = vmatprep.mubr.f32.mxu0 0.0
    %653 = vmatmul.mubr.f32.gmra.mrb[0].mxu0 %v565
    %v654 = vpop.f32.mrb[0].mxu0
    %v655 = vadd.f32 0.0, %v654
    %v656 = vpop.f32.mrb[0].mxu0
    %657 = vdwg.mxu0
    %v658 = vadd.f32 %v562, %v650
    %v659 = vadd.f32 %v563, %v655
    %v660 = vmax.f32 %v658, 0.0
    %v661 = vmax.f32 %v659, 0.0
    %662 = vst [vmem:[#allocation9] sm:$0xff] %v660
    %663 = vst [vmem:[#allocation9 + $0x8] sm:$0xff] %v661
    // Predicated region
    $region34: #{tpu_custom_call.1} parent=1 // pred_check
      _
    $region35: #{tpu_custom_call.1} parent=1 // pred_check_branch
      %665 = sbr.rel (0) target = $region37
    $region36: #{tpu_custom_call.1} parent=1 // pred_region
      %s667 = ssub.s32 256, 256
      %668 = vsyncadd [#allocation5], %s667
      %s669 = sshll.u32 [#allocation9], 4
      %s670 = int_to_ptr.vmem [resolvable:$true] %s669
      %675 = dma.vmem_to_hbm [thread:$0]  %s670, 256, %s5, [#allocation5], 128, 128, 8
    $region37: #{tpu_custom_call.1} parent=1 // pred_fallthru
      _
    // Predicated region
    $region38: #{tpu_custom_call.1} parent=1 // pred_check
      _
    $region39: #{tpu_custom_call.1} parent=1 // pred_check_branch
      %677 = sbr.rel (0) target = $region41
    $region40: #{tpu_custom_call.1} parent=1 // pred_region
      %678 = dma.done [#allocation5], 256
    $region41: #{tpu_custom_call.1} parent=1 // pred_fallthru
      _
    %679 = vsyncpa [#allocation4], 1
    %680 = vsyncpa [#allocation7], 1
    %681 = vsyncpa [#allocation5], 1

</llo_original>
